<compile_context>
chip_gen: v7x
topology: tpu7x:2x2x1
jax: 0.10.0
libtpu: 0.0.40
codegen_flags: <defaults>
</compile_context>

<pallas_src>
import jax
import jax.numpy as jnp
from jax import lax
from jax.experimental import pallas as pl
from jax.experimental.pallas import tpu as pltpu


def _reg_loss_kernel(row_sref,     # SMEM  (B, K) int32   -- clamped row index (scalar prefetch)
                     out_ref,      # VMEM  (D, H, W)      -- feature map, batch b (native dtype)
                     col_ref,      # VMEM  (1, K, 1) i32  -- column index within the row
                     mask_ref,     # VMEM  (1, K, 1) f32
                     tgt_ref,      # VMEM  (D, K, 1) f32  -- target, transposed in wrapper
                     part_ref,     # VMEM  (1, W) f32     -- per-batch partial sums (per lane)
                     rows_ref):    # VMEM  (D, K, W)      -- gathered rows scratch (native dtype)
    b = pl.program_id(0)
    D, K, W = rows_ref.shape

    # ---- Stage 1: row gather -------------------------------------------------
    # Only K combined copies (all D channels per k at once); no per-iteration
    # compare/cast/broadcast work -- row indices come straight from SMEM.
    def gather_row(k, carry):
        r = row_sref[b, k]
        rows_ref[:, pl.ds(k, 1), :] = out_ref[:, pl.ds(r, 1), :]
        return carry

    lax.fori_loop(0, K, gather_row, 0, unroll=(True if K <= 32 else 8))

    # ---- Stage 2: vectorized column select + smooth-L1 over (D, K, W) --------
    col = col_ref[...]                                              # (1, K, 1)
    col_iota = lax.broadcasted_iota(jnp.int32, (1, K, W), 2)        # (1, K, W)
    selm = (col_iota == col).astype(jnp.float32) * mask_ref[...]    # one-hot * mask

    rows = rows_ref[...].astype(jnp.float32)                        # (D, K, W)
    tgt = tgt_ref[...]                                              # (D, K, 1)
    diff = rows * selm - tgt * selm          # == pred*m - target*m on the one-hot column, 0 elsewhere
    ad = jnp.abs(diff)
    elem = jnp.where(ad < 1.0, 0.5 * ad * ad, ad - 0.5)             # smooth_l1(0) == 0

    part = jnp.sum(elem, axis=0)                                    # (K, W)
    part_ref[...] = jnp.sum(part, axis=0, keepdims=True)            # (1, W) lane-dense partial


def _round_up(x, m):
    return ((x + m - 1) // m) * m


def reg_loss(output, mask, ind, target):
    """Pallas RegLoss.

    Args:
      output: (B, D, H, W)  (NCHW, like PyTorch)
      mask:   (B, K)
      ind:    (B, K) int    (indices into H*W)
      target: (B, K, D)
    Returns: scalar float32 loss.
    """
    B, D, H, W = output.shape
    K = ind.shape[1]

    # Precompute (and clamp, matching take_along_axis/gather clamping) the
    # row/column decomposition of `ind`: the kernel then has no integer
    # div/mod and the gather loop no scalar math.
    ind_c = jnp.clip(ind.astype(jnp.int32), 0, H * W - 1)
    row_i = ind_c // W                                           # (B, K)      -> SMEM prefetch
    col_v = (ind_c - row_i * W).reshape(B, 1, K, 1)              # (B, 1, K, 1) -> VMEM
    msk_v = mask.astype(jnp.float32).reshape(B, 1, K, 1)
    tgt_t = jnp.transpose(target.astype(jnp.float32), (0, 2, 1)).reshape(B, D, K, 1)

    # Scoped-VMEM budget with padded tile sizes; capped at 48 MiB (v7x-safe).
    item = jnp.dtype(output.dtype).itemsize
    feat_blk = D * _round_up(H, 8) * _round_up(W, 128) * item
    rows_scr = D * _round_up(K, 8) * _round_up(W, 128) * item
    small_blk = _round_up(K, 8) * 128 * 4 * (2 + D)              # col + mask + target blocks
    out_blk = 8 * _round_up(W, 128) * 4
    needed = 2 * feat_blk + rows_scr + 2 * small_blk + 2 * out_blk + (2 << 20)
    vmem_limit = int(min(max(needed, 32 << 20), 48 << 20))

    grid_spec = pltpu.PrefetchScalarGridSpec(
        num_scalar_prefetch=1,                       # row indices -> SMEM, drive the gather
        grid=(B,),
        in_specs=[
            # Native NCHW feature map, one batch per grid step, no transpose pass.
            pl.BlockSpec((None, D, H, W), lambda b, rs: (b, 0, 0, 0)),
            pl.BlockSpec((None, 1, K, 1), lambda b, rs: (b, 0, 0, 0)),   # col
            pl.BlockSpec((None, 1, K, 1), lambda b, rs: (b, 0, 0, 0)),   # mask
            pl.BlockSpec((None, D, K, 1), lambda b, rs: (b, 0, 0, 0)),   # target (transposed)
        ],
        out_specs=pl.BlockSpec((None, 1, W), lambda b, rs: (b, 0, 0)),
        scratch_shapes=[
            pltpu.VMEM((D, K, W), output.dtype),     # gathered rows; D on untiled outer axis
        ],
    )

    partials = pl.pallas_call(
        _reg_loss_kernel,
        out_shape=jax.ShapeDtypeStruct((B, 1, W), jnp.float32),
        grid_spec=grid_spec,
        compiler_params=pltpu.CompilerParams(
            dimension_semantics=("parallel",),       # no carried state -> both v7x TCs usable
            vmem_limit_bytes=vmem_limit,
        ),
    )(row_i, output, col_v, msk_v, tgt_t)

    num = jnp.sum(mask.astype(jnp.float32))
    return jnp.sum(partials) / (num + 0.0001)


def _reg_loss_ref(output, mask, ind, target):
    """Pure-JAX reference (mirrors the PyTorch semantics) for validation."""
    B, D, H, W = output.shape
    feat = jnp.transpose(output, (0, 2, 3, 1)).reshape(B, H * W, D)
    pred = jnp.take_along_axis(feat, ind[:, :, None].astype(jnp.int32), axis=1)
    num = jnp.sum(mask)
    m = mask[:, :, None]
    diff = pred * m - target * m
    ad = jnp.abs(diff)
    elem = jnp.where(ad < 1.0, 0.5 * ad * ad, ad - 0.5)
    return jnp.sum(elem) / (num + 0.0001)


if __name__ == "__main__":
    B, D, H, W, K = 2, 4, 16, 16, 8

    key = jax.random.PRNGKey(0)
    k1, k2, k3, k4 = jax.random.split(key, 4)

    output = jax.random.normal(k1, (B, D, H, W), dtype=jnp.float32)
    target = jax.random.normal(k2, (B, K, D), dtype=jnp.float32)
    ind = jax.random.randint(k3, (B, K), 0, H * W, dtype=jnp.int32)
    mask = (jax.random.uniform(k4, (B, K)) > 0.3).astype(jnp.float32)

    loss = jax.block_until_ready(reg_loss(output, mask, ind, target))
    ref = jax.block_until_ready(_reg_loss_ref(output, mask, ind, target))

    assert jnp.allclose(loss, ref, rtol=1e-5, atol=1e-5), (loss, ref)
    print("KERNEL_OK")
</pallas_src>

<mosaic_0001>
module attributes {stable_mosaic.version = 11 : i64} {
  func.func @_reg_loss_kernel(%arg0: i32, %arg1: memref<2x8xi32, #tpu.memory_space<smem>>, %arg2: memref<1x4x16x16xf32, #tpu.memory_space<vmem>>, %arg3: memref<1x1x8x1xi32, #tpu.memory_space<vmem>>, %arg4: memref<1x1x8x1xf32, #tpu.memory_space<vmem>>, %arg5: memref<1x4x8x1xf32, #tpu.memory_space<vmem>>, %arg6: memref<1x1x16xf32, #tpu.memory_space<vmem>>, %arg7: memref<4x8x16xf32, #tpu.memory_space<vmem>>) attributes {dimension_semantics = [#tpu.dimension_semantics<parallel>], iteration_bounds = array<i64: 2>, scalar_prefetch = 1 : i64, scratch_operands = 1 : i64, tpu.core_type = #tpu.core_type<tc>, window_params = [{transform_indices = @transform_0, window_bounds = array<i64: 1, 4, 16, 16>}, {transform_indices = @transform_1, window_bounds = array<i64: 1, 1, 8, 1>}, {transform_indices = @transform_2, window_bounds = array<i64: 1, 1, 8, 1>}, {transform_indices = @transform_3, window_bounds = array<i64: 1, 4, 8, 1>}, {transform_indices = @transform_4, window_bounds = array<i64: 1, 1, 16>}]} {
    %c0_i32 = arith.constant 0 : i32
    %0 = arith.index_cast %arg0 : i32 to index
    %1 = arith.index_cast %c0_i32 : i32 to index
    %2 = memref.load %arg1[%0, %1] : memref<2x8xi32, #tpu.memory_space<smem>>
    %c0 = arith.constant 0 : index
    %c0_0 = arith.constant 0 : index
    %3 = arith.index_cast %2 : i32 to index
    %c0_1 = arith.constant 0 : index
    %4 = vector.load %arg2[%c0, %c0_0, %3, %c0_1] : memref<1x4x16x16xf32, #tpu.memory_space<vmem>>, vector<1x4x1x16xf32>
    %5 = vector.shape_cast %4 : vector<1x4x1x16xf32> to vector<4x1x16xf32>
    %c0_2 = arith.constant 0 : index
    %6 = arith.index_cast %c0_i32 : i32 to index
    %c0_3 = arith.constant 0 : index
    %7 = vector.load %arg7[%c0_2, %6, %c0_3] : memref<4x8x16xf32, #tpu.memory_space<vmem>>, vector<4x1x16xf32>
    tpu.vector_store %arg7[%c0_2, %6, %c0_3], %5 {strides = array<i32>} : memref<4x8x16xf32, #tpu.memory_space<vmem>>, vector<4x1x16xf32>,
    %c1_i32 = arith.constant 1 : i32
    %8 = arith.index_cast %arg0 : i32 to index
    %9 = arith.index_cast %c1_i32 : i32 to index
    %10 = memref.load %arg1[%8, %9] : memref<2x8xi32, #tpu.memory_space<smem>>
    %c0_4 = arith.constant 0 : index
    %c0_5 = arith.constant 0 : index
    %11 = arith.index_cast %10 : i32 to index
    %c0_6 = arith.constant 0 : index
    %12 = vector.load %arg2[%c0_4, %c0_5, %11, %c0_6] : memref<1x4x16x16xf32, #tpu.memory_space<vmem>>, vector<1x4x1x16xf32>
    %13 = vector.shape_cast %12 : vector<1x4x1x16xf32> to vector<4x1x16xf32>
    %c0_7 = arith.constant 0 : index
    %14 = arith.index_cast %c1_i32 : i32 to index
    %c0_8 = arith.constant 0 : index
    %15 = vector.load %arg7[%c0_7, %14, %c0_8] : memref<4x8x16xf32, #tpu.memory_space<vmem>>, vector<4x1x16xf32>
    tpu.vector_store %arg7[%c0_7, %14, %c0_8], %13 {strides = array<i32>} : memref<4x8x16xf32, #tpu.memory_space<vmem>>, vector<4x1x16xf32>,
    %c2_i32 = arith.constant 2 : i32
    %16 = arith.index_cast %arg0 : i32 to index
    %17 = arith.index_cast %c2_i32 : i32 to index
    %18 = memref.load %arg1[%16, %17] : memref<2x8xi32, #tpu.memory_space<smem>>
    %c0_9 = arith.constant 0 : index
    %c0_10 = arith.constant 0 : index
    %19 = arith.index_cast %18 : i32 to index
    %c0_11 = arith.constant 0 : index
    %20 = vector.load %arg2[%c0_9, %c0_10, %19, %c0_11] : memref<1x4x16x16xf32, #tpu.memory_space<vmem>>, vector<1x4x1x16xf32>
    %21 = vector.shape_cast %20 : vector<1x4x1x16xf32> to vector<4x1x16xf32>
    %c0_12 = arith.constant 0 : index
    %22 = arith.index_cast %c2_i32 : i32 to index
    %c0_13 = arith.constant 0 : index
    %23 = vector.load %arg7[%c0_12, %22, %c0_13] : memref<4x8x16xf32, #tpu.memory_space<vmem>>, vector<4x1x16xf32>
    tpu.vector_store %arg7[%c0_12, %22, %c0_13], %21 {strides = array<i32>} : memref<4x8x16xf32, #tpu.memory_space<vmem>>, vector<4x1x16xf32>,
    %c3_i32 = arith.constant 3 : i32
    %24 = arith.index_cast %arg0 : i32 to index
    %25 = arith.index_cast %c3_i32 : i32 to index
    %26 = memref.load %arg1[%24, %25] : memref<2x8xi32, #tpu.memory_space<smem>>
    %c0_14 = arith.constant 0 : index
    %c0_15 = arith.constant 0 : index
    %27 = arith.index_cast %26 : i32 to index
    %c0_16 = arith.constant 0 : index
    %28 = vector.load %arg2[%c0_14, %c0_15, %27, %c0_16] : memref<1x4x16x16xf32, #tpu.memory_space<vmem>>, vector<1x4x1x16xf32>
    %29 = vector.shape_cast %28 : vector<1x4x1x16xf32> to vector<4x1x16xf32>
    %c0_17 = arith.constant 0 : index
    %30 = arith.index_cast %c3_i32 : i32 to index
    %c0_18 = arith.constant 0 : index
    %31 = vector.load %arg7[%c0_17, %30, %c0_18] : memref<4x8x16xf32, #tpu.memory_space<vmem>>, vector<4x1x16xf32>
    tpu.vector_store %arg7[%c0_17, %30, %c0_18], %29 {strides = array<i32>} : memref<4x8x16xf32, #tpu.memory_space<vmem>>, vector<4x1x16xf32>,
    %c4_i32 = arith.constant 4 : i32
    %32 = arith.index_cast %arg0 : i32 to index
    %33 = arith.index_cast %c4_i32 : i32 to index
    %34 = memref.load %arg1[%32, %33] : memref<2x8xi32, #tpu.memory_space<smem>>
    %c0_19 = arith.constant 0 : index
    %c0_20 = arith.constant 0 : index
    %35 = arith.index_cast %34 : i32 to index
    %c0_21 = arith.constant 0 : index
    %36 = vector.load %arg2[%c0_19, %c0_20, %35, %c0_21] : memref<1x4x16x16xf32, #tpu.memory_space<vmem>>, vector<1x4x1x16xf32>
    %37 = vector.shape_cast %36 : vector<1x4x1x16xf32> to vector<4x1x16xf32>
    %c0_22 = arith.constant 0 : index
    %38 = arith.index_cast %c4_i32 : i32 to index
    %c0_23 = arith.constant 0 : index
    %39 = vector.load %arg7[%c0_22, %38, %c0_23] : memref<4x8x16xf32, #tpu.memory_space<vmem>>, vector<4x1x16xf32>
    tpu.vector_store %arg7[%c0_22, %38, %c0_23], %37 {strides = array<i32>} : memref<4x8x16xf32, #tpu.memory_space<vmem>>, vector<4x1x16xf32>,
    %c5_i32 = arith.constant 5 : i32
    %40 = arith.index_cast %arg0 : i32 to index
    %41 = arith.index_cast %c5_i32 : i32 to index
    %42 = memref.load %arg1[%40, %41] : memref<2x8xi32, #tpu.memory_space<smem>>
    %c0_24 = arith.constant 0 : index
    %c0_25 = arith.constant 0 : index
    %43 = arith.index_cast %42 : i32 to index
    %c0_26 = arith.constant 0 : index
    %44 = vector.load %arg2[%c0_24, %c0_25, %43, %c0_26] : memref<1x4x16x16xf32, #tpu.memory_space<vmem>>, vector<1x4x1x16xf32>
    %45 = vector.shape_cast %44 : vector<1x4x1x16xf32> to vector<4x1x16xf32>
    %c0_27 = arith.constant 0 : index
    %46 = arith.index_cast %c5_i32 : i32 to index
    %c0_28 = arith.constant 0 : index
    %47 = vector.load %arg7[%c0_27, %46, %c0_28] : memref<4x8x16xf32, #tpu.memory_space<vmem>>, vector<4x1x16xf32>
    tpu.vector_store %arg7[%c0_27, %46, %c0_28], %45 {strides = array<i32>} : memref<4x8x16xf32, #tpu.memory_space<vmem>>, vector<4x1x16xf32>,
    %c6_i32 = arith.constant 6 : i32
    %48 = arith.index_cast %arg0 : i32 to index
    %49 = arith.index_cast %c6_i32 : i32 to index
    %50 = memref.load %arg1[%48, %49] : memref<2x8xi32, #tpu.memory_space<smem>>
    %c0_29 = arith.constant 0 : index
    %c0_30 = arith.constant 0 : index
    %51 = arith.index_cast %50 : i32 to index
    %c0_31 = arith.constant 0 : index
    %52 = vector.load %arg2[%c0_29, %c0_30, %51, %c0_31] : memref<1x4x16x16xf32, #tpu.memory_space<vmem>>, vector<1x4x1x16xf32>
    %53 = vector.shape_cast %52 : vector<1x4x1x16xf32> to vector<4x1x16xf32>
    %c0_32 = arith.constant 0 : index
    %54 = arith.index_cast %c6_i32 : i32 to index
    %c0_33 = arith.constant 0 : index
    %55 = vector.load %arg7[%c0_32, %54, %c0_33] : memref<4x8x16xf32, #tpu.memory_space<vmem>>, vector<4x1x16xf32>
    tpu.vector_store %arg7[%c0_32, %54, %c0_33], %53 {strides = array<i32>} : memref<4x8x16xf32, #tpu.memory_space<vmem>>, vector<4x1x16xf32>,
    %c7_i32 = arith.constant 7 : i32
    %56 = arith.index_cast %arg0 : i32 to index
    %57 = arith.index_cast %c7_i32 : i32 to index
    %58 = memref.load %arg1[%56, %57] : memref<2x8xi32, #tpu.memory_space<smem>>
    %c0_34 = arith.constant 0 : index
    %c0_35 = arith.constant 0 : index
    %59 = arith.index_cast %58 : i32 to index
    %c0_36 = arith.constant 0 : index
    %60 = vector.load %arg2[%c0_34, %c0_35, %59, %c0_36] : memref<1x4x16x16xf32, #tpu.memory_space<vmem>>, vector<1x4x1x16xf32>
    %61 = vector.shape_cast %60 : vector<1x4x1x16xf32> to vector<4x1x16xf32>
    %c0_37 = arith.constant 0 : index
    %62 = arith.index_cast %c7_i32 : i32 to index
    %c0_38 = arith.constant 0 : index
    %63 = vector.load %arg7[%c0_37, %62, %c0_38] : memref<4x8x16xf32, #tpu.memory_space<vmem>>, vector<4x1x16xf32>
    tpu.vector_store %arg7[%c0_37, %62, %c0_38], %61 {strides = array<i32>} : memref<4x8x16xf32, #tpu.memory_space<vmem>>, vector<4x1x16xf32>,
    %c8_i32 = arith.constant 8 : i32
    %c0_39 = arith.constant 0 : index
    %c0_40 = arith.constant 0 : index
    %c0_41 = arith.constant 0 : index
    %c0_42 = arith.constant 0 : index
    %64 = vector.load %arg3[%c0_39, %c0_40, %c0_41, %c0_42] : memref<1x1x8x1xi32, #tpu.memory_space<vmem>>, vector<1x1x8x1xi32>
    %65 = vector.shape_cast %64 : vector<1x1x8x1xi32> to vector<1x8x1xi32>
    %66 = tpu.iota {dimensions = array<i32: 2>} : vector<1x8x16xi32>
    %67 = vector.broadcast %65 : vector<1x8x1xi32> to vector<1x8x16xi32>
    %68 = arith.cmpi eq, %66, %67 : vector<1x8x16xi32>
    %69 = arith.extui %68 : vector<1x8x16xi1> to vector<1x8x16xi32>
    %70 = arith.sitofp %69 : vector<1x8x16xi32> to vector<1x8x16xf32>
    %c0_43 = arith.constant 0 : index
    %c0_44 = arith.constant 0 : index
    %c0_45 = arith.constant 0 : index
    %c0_46 = arith.constant 0 : index
    %71 = vector.load %arg4[%c0_43, %c0_44, %c0_45, %c0_46] : memref<1x1x8x1xf32, #tpu.memory_space<vmem>>, vector<1x1x8x1xf32>
    %72 = vector.shape_cast %71 : vector<1x1x8x1xf32> to vector<1x8x1xf32>
    %73 = vector.broadcast %72 : vector<1x8x1xf32> to vector<1x8x16xf32>
    %74 = arith.mulf %70, %73 : vector<1x8x16xf32>
    %c0_47 = arith.constant 0 : index
    %c0_48 = arith.constant 0 : index
    %c0_49 = arith.constant 0 : index
    %75 = vector.load %arg7[%c0_47, %c0_48, %c0_49] : memref<4x8x16xf32, #tpu.memory_space<vmem>>, vector<4x8x16xf32>
    %c0_50 = arith.constant 0 : index
    %c0_51 = arith.constant 0 : index
    %c0_52 = arith.constant 0 : index
    %c0_53 = arith.constant 0 : index
    %76 = vector.load %arg5[%c0_50, %c0_51, %c0_52, %c0_53] : memref<1x4x8x1xf32, #tpu.memory_space<vmem>>, vector<1x4x8x1xf32>
    %77 = vector.shape_cast %76 : vector<1x4x8x1xf32> to vector<4x8x1xf32>
    %78 = vector.broadcast %74 : vector<1x8x16xf32> to vector<4x8x16xf32>
    %79 = arith.mulf %75, %78 : vector<4x8x16xf32>
    %80 = vector.broadcast %77 : vector<4x8x1xf32> to vector<4x8x16xf32>
    %81 = vector.broadcast %74 : vector<1x8x16xf32> to vector<4x8x16xf32>
    %82 = arith.mulf %80, %81 : vector<4x8x16xf32>
    %83 = arith.subf %79, %82 : vector<4x8x16xf32>
    %84 = math.absf %83 : vector<4x8x16xf32>
    %cst = arith.constant 1.000000e+00 : f32
    %85 = vector.broadcast %cst : f32 to vector<4x8x16xf32>
    %86 = arith.cmpf olt, %84, %85 : vector<4x8x16xf32>
    %cst_54 = arith.constant 5.000000e-01 : f32
    %87 = vector.broadcast %cst_54 : f32 to vector<4x8x16xf32>
    %88 = arith.mulf %87, %84 : vector<4x8x16xf32>
    %89 = arith.mulf %88, %84 : vector<4x8x16xf32>
    %cst_55 = arith.constant 5.000000e-01 : f32
    %90 = vector.broadcast %cst_55 : f32 to vector<4x8x16xf32>
    %91 = arith.subf %84, %90 : vector<4x8x16xf32>
    %92 = arith.select %86, %89, %91 : vector<4x8x16xi1>, vector<4x8x16xf32>
    %cst_56 = arith.constant dense<0.000000e+00> : vector<8x16xf32>
    %93 = vector.multi_reduction <add>, %92, %cst_56 [0] : vector<4x8x16xf32> to vector<8x16xf32>
    %cst_57 = arith.constant dense<0.000000e+00> : vector<16xf32>
    %94 = vector.multi_reduction <add>, %93, %cst_57 [0] : vector<8x16xf32> to vector<16xf32>
    %95 = vector.shape_cast %94 : vector<16xf32> to vector<1x16xf32>
    %c0_58 = arith.constant 0 : index
    %c0_59 = arith.constant 0 : index
    %c0_60 = arith.constant 0 : index
    %96 = vector.load %arg6[%c0_58, %c0_59, %c0_60] : memref<1x1x16xf32, #tpu.memory_space<vmem>>, vector<1x1x16xf32>
    %97 = vector.shape_cast %96 : vector<1x1x16xf32> to vector<1x16xf32>
    %98 = vector.shape_cast %95 : vector<1x16xf32> to vector<1x1x16xf32>
    tpu.vector_store %arg6[%c0_58, %c0_59, %c0_60], %98 {strides = array<i32>} : memref<1x1x16xf32, #tpu.memory_space<vmem>>, vector<1x1x16xf32>,
    return
  }
  func.func @transform_0(%arg0: i32, %arg1: memref<2x8xi32, #tpu.memory_space<smem>>) -> (i32, i32, i32, i32) {
    %c0_i32 = arith.constant 0 : i32
    %c0_i32_0 = arith.constant 0 : i32
    %c0_i32_1 = arith.constant 0 : i32
    %c0_i32_2 = arith.constant 0 : i32
    return %arg0, %c0_i32, %c0_i32_0, %c0_i32_1 : i32, i32, i32, i32
  }
  func.func @transform_1(%arg0: i32, %arg1: memref<2x8xi32, #tpu.memory_space<smem>>) -> (i32, i32, i32, i32) {
    %c0_i32 = arith.constant 0 : i32
    %c0_i32_0 = arith.constant 0 : i32
    %c0_i32_1 = arith.constant 0 : i32
    %c0_i32_2 = arith.constant 0 : i32
    return %arg0, %c0_i32, %c0_i32_0, %c0_i32_1 : i32, i32, i32, i32
  }
  func.func @transform_2(%arg0: i32, %arg1: memref<2x8xi32, #tpu.memory_space<smem>>) -> (i32, i32, i32, i32) {
    %c0_i32 = arith.constant 0 : i32
    %c0_i32_0 = arith.constant 0 : i32
    %c0_i32_1 = arith.constant 0 : i32
    %c0_i32_2 = arith.constant 0 : i32
    return %arg0, %c0_i32, %c0_i32_0, %c0_i32_1 : i32, i32, i32, i32
  }
  func.func @transform_3(%arg0: i32, %arg1: memref<2x8xi32, #tpu.memory_space<smem>>) -> (i32, i32, i32, i32) {
    %c0_i32 = arith.constant 0 : i32
    %c0_i32_0 = arith.constant 0 : i32
    %c0_i32_1 = arith.constant 0 : i32
    %c0_i32_2 = arith.constant 0 : i32
    return %arg0, %c0_i32, %c0_i32_0, %c0_i32_1 : i32, i32, i32, i32
  }
  func.func @transform_4(%arg0: i32, %arg1: memref<2x8xi32, #tpu.memory_space<smem>>) -> (i32, i32, i32) {
    %c0_i32 = arith.constant 0 : i32
    %c0_i32_0 = arith.constant 0 : i32
    %c0_i32_1 = arith.constant 0 : i32
    return %arg0, %c0_i32, %c0_i32_0 : i32, i32, i32
  }
}

</mosaic_0001>

<llo_original>
// kernel: tpu_custom_call.1
$region0: #{tpu_custom_call.1}
  #allocation0 [shape = 'u32[]', space=smem, size = 0x4, offset = 0x4, fixed_abs, tag = 'smem constant byte address 0x4 - core index']
  #allocation1 [shape = 'u32[144,128]{1,0:T(1,128)}', space=vmem, size = 0x12000, scoped, tag = 'internal scratch']
  #allocation2 [shape = 'f32[4,8,16]{2,1,0:T(8,128)}', space=vmem, size = 0x4000, scoped, tag = 'scratch operand']
  #allocation3 [shape = 's32[1]{0}', space=sflag, size = 0x4, scoped, tag = 'scoped memory for tpu_custom_call.1']
  #allocation4 [shape = 'u8[1024]{0}', space=smem, size = 0x400, scoped, tag = 'prefetched SMEM operand 0']
  %s0 = inlined_call_operand.vmem [shape: s32[2,8], index: 0, kind: input, shape index: {}]
  %s1 = inlined_call_operand.hbm [shape: f32[2,4,16,16], index: 1, kind: input, shape index: {}]
  %s2 = inlined_call_operand.vmem [shape: s32[2,1,8,1], index: 2, kind: input, shape index: {}]
  %s3 = inlined_call_operand.vmem [shape: f32[2,1,8,1], index: 3, kind: input, shape index: {}]
  %s4 = inlined_call_operand.vmem [shape: f32[2,4,8,1], index: 4, kind: input, shape index: {}]
  %s5 = inlined_call_operand.hbm [shape: f32[2,1,16], index: 5, kind: output, shape index: {}]
  %s6 = sld [smem:[#allocation0]]
  $region53: #{tpu_custom_call.1} parent=0
    _
  %s8 = ssub.s32 1, %s6
  %s9 = scalar_select 0, %s8, %s6
  %s10 = sshll.u32 %s0, 4
  %s11 = int_to_ptr.vmem [resolvable:$true] %s10
  %13 = dma.vmem_to_smem %s11, 32, [#allocation4], [#allocation3]
  %14 = dma.done [#allocation3], 32
  %15 = sfence
  $region1: #{tpu_custom_call.1} parent=0
    #allocation5 [shape = 'u8[65536]{0}', space=vmem, size = 0x10000, scoped, tag = 'input window, operand 1']
    #allocation6 [shape = 's32[2]{0}', space=sflag, size = 0x8, scoped, tag = 'scoped memory for tpu_custom_call.1']
    #allocation7 [shape = 's32[2]{0}', space=sflag, size = 0x8, scoped, tag = 'scoped memory for tpu_custom_call.1']
    #allocation8 [shape = 'u8[1024]{0}', space=vmem, size = 0x400, scoped, tag = 'output window, operand 0']
    %16 = vsyncpa [#allocation6], 0
    %s17 = scalar_lea.sflag [#allocation6], 1
    %18 = vsyncpa %s17, 0
    %19 = vsyncpa [#allocation7], 0
    %s20 = scalar_lea.sflag [#allocation7], 1
    %21 = vsyncpa %s20, 0
    loop: start=0, step=1, limit=4
    $region2: #{tpu_custom_call.1} parent=1 // loop_pre_header
      _
    $region3: #{tpu_custom_call.1} parent=1 // loop_header
      %s23 = sphi 0, %s27
      %p24 = scmp.ge.s32.totalorder %s23, 4
      %s33 = sphi 0, %s35
      %s36 = sphi 0, %s33
      %s37 = sphi 0, %s36
      %s53 = sphi 0, %s37
      %s59 = sphi 0, %s61
      %s62 = sphi 0, %s59
      %s63 = sphi 0, %s62
      %s79 = sphi 0, %s63
      %s85 = sphi 0, %s87
      %s88 = sphi 0, %s85
      %s89 = sphi 0, %s88
      %s105 = sphi 0, %s89
      %s111 = sphi 0, %s113
      %s114 = sphi 0, %s111
      %s115 = sphi 0, %s114
      %s131 = sphi 0, %s115
      %s137 = sphi 0, %s139
      %s140 = sphi 0, %s137
      %s141 = sphi 0, %s140
      %s157 = sphi 0, %s141
    $region4: #{tpu_custom_call.1} parent=1 // loop_header_branch
      %26 = sbr.rel (%p24) target = $region8
    $region5: #{tpu_custom_call.1} parent=1 // loop_body
      %s28 = ssub.s32 %s23, 1
      %s29 = ssub.s32 %s23, 2
      %s30 = sadd.s32 %s23, 1
      %s31 = ssub.s32 %s23, %s30
      %p32 = scmp.eq.s32.totalorder %s31, 0
      %s34 = sadd.s32 %s33, 1
      %s35 = scalar_select %p32, %s33, %s34
      %p38 = pneg %p32
      %p39 = scmp.eq.s32.totalorder %s23, 1
      %p40 = por %p38, %p39
      %p41 = scmp.ne.s32.totalorder %s33, %s36
      %p42 = scmp.eq.s32.totalorder %s23, 0
      %p43 = por %p41, %p42
      %p44 = scmp.ne.s32.totalorder %s33, %s36
      %p45 = scmp.eq.s32.totalorder %s28, 1
      %p46 = por %p44, %p45
      %p47 = scmp.ne.s32.totalorder %s36, %s37
      %p48 = scmp.eq.s32.totalorder %s28, 0
      %p49 = por %p47, %p48
      %p50 = scmp.ne.s32.totalorder %s36, %s37
      %p51 = scmp.eq.s32.totalorder %s29, 1
      %p52 = por %p50, %p51
      %p54 = scmp.ne.s32.totalorder %s37, %s53
      %p55 = scmp.eq.s32.totalorder %s29, 0
      %p56 = por %p54, %p55
      %s57 = ssub.s32 %s23, %s30
      %p58 = scmp.eq.s32.totalorder %s57, 0
      %s60 = sadd.s32 %s59, 1
      %s61 = scalar_select %p58, %s59, %s60
      %p64 = pneg %p58
      %p65 = scmp.eq.s32.totalorder %s23, 1
      %p66 = por %p64, %p65
      %p67 = scmp.ne.s32.totalorder %s59, %s62
      %p68 = scmp.eq.s32.totalorder %s23, 0
      %p69 = por %p67, %p68
      %p70 = scmp.ne.s32.totalorder %s59, %s62
      %p71 = scmp.eq.s32.totalorder %s28, 1
      %p72 = por %p70, %p71
      %p73 = scmp.ne.s32.totalorder %s62, %s63
      %p74 = scmp.eq.s32.totalorder %s28, 0
      %p75 = por %p73, %p74
      %p76 = scmp.ne.s32.totalorder %s62, %s63
      %p77 = scmp.eq.s32.totalorder %s29, 1
      %p78 = por %p76, %p77
      %p80 = scmp.ne.s32.totalorder %s63, %s79
      %p81 = scmp.eq.s32.totalorder %s29, 0
      %p82 = por %p80, %p81
      %s83 = ssub.s32 %s23, %s30
      %p84 = scmp.eq.s32.totalorder %s83, 0
      %s86 = sadd.s32 %s85, 1
      %s87 = scalar_select %p84, %s85, %s86
      %p90 = pneg %p84
      %p91 = scmp.eq.s32.totalorder %s23, 1
      %p92 = por %p90, %p91
      %p93 = scmp.ne.s32.totalorder %s85, %s88
      %p94 = scmp.eq.s32.totalorder %s23, 0
      %p95 = por %p93, %p94
      %p96 = scmp.ne.s32.totalorder %s85, %s88
      %p97 = scmp.eq.s32.totalorder %s28, 1
      %p98 = por %p96, %p97
      %p99 = scmp.ne.s32.totalorder %s88, %s89
      %p100 = scmp.eq.s32.totalorder %s28, 0
      %p101 = por %p99, %p100
      %p102 = scmp.ne.s32.totalorder %s88, %s89
      %p103 = scmp.eq.s32.totalorder %s29, 1
      %p104 = por %p102, %p103
      %p106 = scmp.ne.s32.totalorder %s89, %s105
      %p107 = scmp.eq.s32.totalorder %s29, 0
      %p108 = por %p106, %p107
      %s109 = ssub.s32 %s23, %s30
      %p110 = scmp.eq.s32.totalorder %s109, 0
      %s112 = sadd.s32 %s111, 1
      %s113 = scalar_select %p110, %s111, %s112
      %p116 = pneg %p110
      %p117 = scmp.eq.s32.totalorder %s23, 1
      %p118 = por %p116, %p117
      %p119 = scmp.ne.s32.totalorder %s111, %s114
      %p120 = scmp.eq.s32.totalorder %s23, 0
      %p121 = por %p119, %p120
      %p122 = scmp.ne.s32.totalorder %s111, %s114
      %p123 = scmp.eq.s32.totalorder %s28, 1
      %p124 = por %p122, %p123
      %p125 = scmp.ne.s32.totalorder %s114, %s115
      %p126 = scmp.eq.s32.totalorder %s28, 0
      %p127 = por %p125, %p126
      %p128 = scmp.ne.s32.totalorder %s114, %s115
      %p129 = scmp.eq.s32.totalorder %s29, 1
      %p130 = por %p128, %p129
      %p132 = scmp.ne.s32.totalorder %s115, %s131
      %p133 = scmp.eq.s32.totalorder %s29, 0
      %p134 = por %p132, %p133
      %s135 = ssub.s32 %s23, %s30
      %p136 = scmp.eq.s32.totalorder %s135, 0
      %s138 = sadd.s32 %s137, 1
      %s139 = scalar_select %p136, %s137, %s138
      %p142 = pneg %p136
      %p143 = scmp.eq.s32.totalorder %s23, 1
      %p144 = por %p142, %p143
      %p145 = scmp.ne.s32.totalorder %s137, %s140
      %p146 = scmp.eq.s32.totalorder %s23, 0
      %p147 = por %p145, %p146
      %p148 = scmp.ne.s32.totalorder %s137, %s140
      %p149 = scmp.eq.s32.totalorder %s28, 1
      %p150 = por %p148, %p149
      %p151 = scmp.ne.s32.totalorder %s140, %s141
      %p152 = scmp.eq.s32.totalorder %s28, 0
      %p153 = por %p151, %p152
      %p154 = scmp.ne.s32.totalorder %s140, %s141
      %p155 = scmp.eq.s32.totalorder %s29, 1
      %p156 = por %p154, %p155
      %p158 = scmp.ne.s32.totalorder %s141, %s157
      %p159 = scmp.eq.s32.totalorder %s29, 0
      %p160 = por %p158, %p159
      %p161 = scmp.le.s32.totalorder 1, %s23
      %p162 = scmp.lt.s32.totalorder %s23, 3
      %p163 = pnand %p161, %p162
      %p164 = pneg %p163
      // Predicated region
      $region9: #{tpu_custom_call.1} parent=5 // pred_check
        _
      $region10: #{tpu_custom_call.1} parent=5 // pred_check_branch
        %166 = sbr.rel (%p163) target = $region12
      $region11: #{tpu_custom_call.1} parent=5 // pred_region
        %s167 = ssub.s32 %s23, 1
      $region12: #{tpu_custom_call.1} parent=5 // pred_fallthru
        _
      %p168 = scmp.lt.s32.totalorder %s23, 2
      // Predicated region
      $region13: #{tpu_custom_call.1} parent=5 // pred_check
        %p169 = pneg %p168
      $region14: #{tpu_custom_call.1} parent=5 // pred_check_branch
        %171 = sbr.rel (%p169) target = $region16
      $region15: #{tpu_custom_call.1} parent=5 // pred_region
        // Predicated region
        $region17: #{tpu_custom_call.1} parent=15 // pred_check
          %p172 = pneg %p43
        $region18: #{tpu_custom_call.1} parent=15 // pred_check_branch
          %174 = sbr.rel (%p172) target = $region20
        $region19: #{tpu_custom_call.1} parent=15 // pred_region
          %s175 = sand.u32 %s33, 1
          %s176 = scalar_lea.sflag [#allocation6], %s175
          %s177 = sand.u32 %s33, 1
          %s178 = smul.addr %s177, 64
          %s179 = scalar_lea.vmem [#allocation5], %s178
          %s181 = ssub.s32 1024, 1024
          %182 = vsyncadd %s176, %s181
          %s183 = smul.addr %s23, 8
          %s184 = smul.addr %s183, 128
          %s185 = scalar_lea.hbm %s1, %s184
          %s186 = sshll.u32 %s179, 4
          %s187 = int_to_ptr.vmem [resolvable:$true] %s186
          %192 = dma.hbm_to_vmem [thread:$0]  %s185, 1024, %s187, %s176, 128, 128, 8
        $region20: #{tpu_custom_call.1} parent=15 // pred_fallthru
          _
        // Predicated region
        $region21: #{tpu_custom_call.1} parent=15 // pred_check
          %p193 = pneg %p69
        $region22: #{tpu_custom_call.1} parent=15 // pred_check_branch
          %195 = sbr.rel (%p193) target = $region24
        $region23: #{tpu_custom_call.1} parent=15 // pred_region
          %p196 = scmp.lt.s32.totalorder %s23, 1
          %s197 = scalar_select %p196, %s23, 1
          %s198 = smul.addr %s197, 8
          %s199 = scalar_lea.vmem %s2, %s198
        $region24: #{tpu_custom_call.1} parent=15 // pred_fallthru
          _
        // Predicated region
        $region25: #{tpu_custom_call.1} parent=15 // pred_check
          %p200 = pneg %p95
        $region26: #{tpu_custom_call.1} parent=15 // pred_check_branch
          %202 = sbr.rel (%p200) target = $region28
        $region27: #{tpu_custom_call.1} parent=15 // pred_region
          %p203 = scmp.lt.s32.totalorder %s23, 1
          %s204 = scalar_select %p203, %s23, 1
          %s205 = smul.addr %s204, 8
          %s206 = scalar_lea.vmem %s3, %s205
        $region28: #{tpu_custom_call.1} parent=15 // pred_fallthru
          _
        // Predicated region
        $region29: #{tpu_custom_call.1} parent=15 // pred_check
          %p207 = pneg %p121
        $region30: #{tpu_custom_call.1} parent=15 // pred_check_branch
          %209 = sbr.rel (%p207) target = $region32
        $region31: #{tpu_custom_call.1} parent=15 // pred_region
          %p210 = scmp.lt.s32.totalorder %s23, 1
          %s211 = scalar_select %p210, %s23, 1
          %s212 = smul.addr %s211, 4
          %s213 = smul.addr %s212, 8
          %s214 = scalar_lea.vmem %s4, %s213
        $region32: #{tpu_custom_call.1} parent=15 // pred_fallthru
          _
      $region16: #{tpu_custom_call.1} parent=5 // pred_fallthru
        _
      %p215 = scmp.le.s32.totalorder 1, %s23
      %p216 = scmp.lt.s32.totalorder %s23, 3
      %p217 = pnand %p215, %p216
      %p218 = pneg %p217
      // Predicated region
      $region33: #{tpu_custom_call.1} parent=5 // pred_check
        _
      $region34: #{tpu_custom_call.1} parent=5 // pred_check_branch
        %220 = sbr.rel (%p217) target = $region36
      $region35: #{tpu_custom_call.1} parent=5 // pred_region
        %s221 = ssub.s32 %s23, 1
        %s222 = sand.u32 %s36, 1
        %s223 = scalar_lea.sflag [#allocation6], %s222
        %s224 = sand.u32 %s36, 1
        %s225 = smul.addr %s224, 64
        %s226 = scalar_lea.vmem [#allocation5], %s225
        // Predicated region
        $region37: #{tpu_custom_call.1} parent=35 // pred_check
          %p227 = pneg %p49
        $region38: #{tpu_custom_call.1} parent=35 // pred_check_branch
          %229 = sbr.rel (%p227) target = $region40
        $region39: #{tpu_custom_call.1} parent=35 // pred_region
          %230 = dma.done %s223, 1024
        $region40: #{tpu_custom_call.1} parent=35 // pred_fallthru
          _
        %s231 = sand.u32 %s36, 1
        %s232 = scalar_lea.sflag [#allocation6], %s231
        %s233 = sand.u32 %s36, 1
        %s234 = smul.addr %s233, 64
        %s235 = scalar_lea.vmem [#allocation5], %s234
        %p236 = pneg %p49
        %p237 = pneg %p46
        %p238 = scmp.lt.s32.totalorder %s28, 1
        %s239 = scalar_select %p238, %s28, 1
        %s240 = smul.addr %s239, 8
        %s241 = scalar_lea.vmem %s2, %s240
        %p242 = pneg %p75
        %p243 = pneg %p72
        %p244 = scmp.lt.s32.totalorder %s28, 1
        %s245 = scalar_select %p244, %s28, 1
        %s246 = smul.addr %s245, 8
        %s247 = scalar_lea.vmem %s3, %s246
        %p248 = pneg %p101
        %p249 = pneg %p98
        %p250 = scmp.lt.s32.totalorder %s28, 1
        %s251 = scalar_select %p250, %s28, 1
        %s252 = smul.addr %s251, 4
        %s253 = smul.addr %s252, 8
        %s254 = scalar_lea.vmem %s4, %s253
        %p255 = pneg %p127
        %p256 = pneg %p124
        %p257 = pneg %p153
        %p258 = pneg %p150
        %s259 = sand.u32 %s140, 1
        %s260 = scalar_lea.sflag [#allocation7], %s259
        %s261 = sand.u32 %s140, 1
        %s262 = scalar_lea.vmem [#allocation8], %s261
        %p263 = scmp.lt.s32.totalorder %s28, 1
        %s264 = scalar_select %p263, %s28, 1
        %s265 = smul.addr %s264, 8
        %s266 = scalar_lea.vmem %s2, %s265
        %p267 = scmp.lt.s32.totalorder %s28, 1
        %s268 = scalar_select %p267, %s28, 1
        %s269 = smul.addr %s268, 8
        %s270 = scalar_lea.vmem %s3, %s269
        %p271 = scmp.lt.s32.totalorder %s28, 1
        %s272 = scalar_select %p271, %s28, 1
        %s273 = smul.addr %s272, 4
        %s274 = smul.addr %s273, 8
        %s275 = scalar_lea.vmem %s4, %s274
        %s276 = smul.u32 %s28, 128
        %s277 = sld [smem:[#allocation4 + %s276]]
        %s278 = scalar_lea.vmem %s226, %s277 [#allocation5]
        %v279 = vld [vmem:[%s278] sm:$0x1]
        %v280 = vld [vmem:[%s278 + $0x10] sm:$0x1]
        %v281 = vld [vmem:[%s278 + $0x20] sm:$0x1]
        %v282 = vld [vmem:[%s278 + $0x30] sm:$0x1]
        %vm283 = vcmask 122880
        %284 = vst.msk [vmem:[#allocation2] sm:$0x1] %vm283, %v279
        %285 = vst.msk [vmem:[#allocation2 + $0x8] sm:$0x1] %vm283, %v280
        %286 = vst.msk [vmem:[#allocation2 + $0x10] sm:$0x1] %vm283, %v281
        %287 = vst.msk [vmem:[#allocation2 + $0x18] sm:$0x1] %vm283, %v282
        %s288 = sadd.s32 %s276, 1
        %s289 = sld [smem:[#allocation4 + %s288]]
        %s290 = scalar_lea.vmem %s226, %s289 [#allocation5]
        %v291 = vld [vmem:[%s290] sm:$0x1]
        %v292 = vld [vmem:[%s290 + $0x10] sm:$0x1]
        %v293 = vld [vmem:[%s290 + $0x20] sm:$0x1]
        %v294 = vld [vmem:[%s290 + $0x30] sm:$0x1]
        %295 = vst.msk [vmem:[#allocation2 + $0x1] sm:$0x1] %vm283, %v291
        %296 = vst.msk [vmem:[#allocation2 + $0x9] sm:$0x1] %vm283, %v292
        %297 = vst.msk [vmem:[#allocation2 + $0x11] sm:$0x1] %vm283, %v293
        %298 = vst.msk [vmem:[#allocation2 + $0x19] sm:$0x1] %vm283, %v294
        %s299 = sadd.s32 %s276, 2
        %s300 = sld [smem:[#allocation4 + %s299]]
        %s301 = scalar_lea.vmem %s226, %s300 [#allocation5]
        %v302 = vld [vmem:[%s301] sm:$0x1]
        %v303 = vld [vmem:[%s301 + $0x10] sm:$0x1]
        %v304 = vld [vmem:[%s301 + $0x20] sm:$0x1]
        %v305 = vld [vmem:[%s301 + $0x30] sm:$0x1]
        %306 = vst.msk [vmem:[#allocation2 + $0x2] sm:$0x1] %vm283, %v302
        %307 = vst.msk [vmem:[#allocation2 + $0xa] sm:$0x1] %vm283, %v303
        %308 = vst.msk [vmem:[#allocation2 + $0x12] sm:$0x1] %vm283, %v304
        %309 = vst.msk [vmem:[#allocation2 + $0x1a] sm:$0x1] %vm283, %v305
        %s310 = sadd.s32 %s276, 3
        %s311 = sld [smem:[#allocation4 + %s310]]
        %s312 = scalar_lea.vmem %s226, %s311 [#allocation5]
        %v313 = vld [vmem:[%s312] sm:$0x1]
        %v314 = vld [vmem:[%s312 + $0x10] sm:$0x1]
        %v315 = vld [vmem:[%s312 + $0x20] sm:$0x1]
        %v316 = vld [vmem:[%s312 + $0x30] sm:$0x1]
        %317 = vst.msk [vmem:[#allocation2 + $0x3] sm:$0x1] %vm283, %v313
        %318 = vst.msk [vmem:[#allocation2 + $0xb] sm:$0x1] %vm283, %v314
        %319 = vst.msk [vmem:[#allocation2 + $0x13] sm:$0x1] %vm283, %v315
        %320 = vst.msk [vmem:[#allocation2 + $0x1b] sm:$0x1] %vm283, %v316
        %s321 = sadd.s32 %s276, 4
        %s322 = sld [smem:[#allocation4 + %s321]]
        %s323 = scalar_lea.vmem %s226, %s322 [#allocation5]
        %v324 = vld [vmem:[%s323] sm:$0x1]
        %v325 = vld [vmem:[%s323 + $0x10] sm:$0x1]
        %v326 = vld [vmem:[%s323 + $0x20] sm:$0x1]
        %v327 = vld [vmem:[%s323 + $0x30] sm:$0x1]
        %328 = vst.msk [vmem:[#allocation2 + $0x4] sm:$0x1] %vm283, %v324
        %329 = vst.msk [vmem:[#allocation2 + $0xc] sm:$0x1] %vm283, %v325
        %330 = vst.msk [vmem:[#allocation2 + $0x14] sm:$0x1] %vm283, %v326
        %331 = vst.msk [vmem:[#allocation2 + $0x1c] sm:$0x1] %vm283, %v327
        %s332 = sadd.s32 %s276, 5
        %s333 = sld [smem:[#allocation4 + %s332]]
        %s334 = scalar_lea.vmem %s226, %s333 [#allocation5]
        %v335 = vld [vmem:[%s334] sm:$0x1]
        %v336 = vld [vmem:[%s334 + $0x10] sm:$0x1]
        %v337 = vld [vmem:[%s334 + $0x20] sm:$0x1]
        %v338 = vld [vmem:[%s334 + $0x30] sm:$0x1]
        %339 = vst.msk [vmem:[#allocation2 + $0x5] sm:$0x1] %vm283, %v335
        %340 = vst.msk [vmem:[#allocation2 + $0xd] sm:$0x1] %vm283, %v336
        %341 = vst.msk [vmem:[#allocation2 + $0x15] sm:$0x1] %vm283, %v337
        %342 = vst.msk [vmem:[#allocation2 + $0x1d] sm:$0x1] %vm283, %v338
        %s343 = sadd.s32 %s276, 6
        %s344 = sld [smem:[#allocation4 + %s343]]
        %s345 = scalar_lea.vmem %s226, %s344 [#allocation5]
        %v346 = vld [vmem:[%s345] sm:$0x1]
        %v347 = vld [vmem:[%s345 + $0x10] sm:$0x1]
        %v348 = vld [vmem:[%s345 + $0x20] sm:$0x1]
        %v349 = vld [vmem:[%s345 + $0x30] sm:$0x1]
        %350 = vst.msk [vmem:[#allocation2 + $0x6] sm:$0x1] %vm283, %v346
        %351 = vst.msk [vmem:[#allocation2 + $0xe] sm:$0x1] %vm283, %v347
        %352 = vst.msk [vmem:[#allocation2 + $0x16] sm:$0x1] %vm283, %v348
        %353 = vst.msk [vmem:[#allocation2 + $0x1e] sm:$0x1] %vm283, %v349
        %s354 = sadd.s32 %s276, 7
        %s355 = sld [smem:[#allocation4 + %s354]]
        %s356 = scalar_lea.vmem %s226, %s355 [#allocation5]
        %v357 = vld [vmem:[%s356] sm:$0x1]
        %v358 = vld [vmem:[%s356 + $0x10] sm:$0x1]
        %v359 = vld [vmem:[%s356 + $0x20] sm:$0x1]
        %v360 = vld [vmem:[%s356 + $0x30] sm:$0x1]
        %361 = vst.msk [vmem:[#allocation2 + $0x7] sm:$0x1] %vm283, %v357
        %362 = vst.msk [vmem:[#allocation2 + $0xf] sm:$0x1] %vm283, %v358
        %363 = vst.msk [vmem:[#allocation2 + $0x17] sm:$0x1] %vm283, %v359
        %364 = vst.msk [vmem:[#allocation2 + $0x1f] sm:$0x1] %vm283, %v360
        %v365 = vld [vmem:[%s266] sm:$0xff]
        %v366 = vlaneseq
        %v367 = vand.u32 %v366, 127
        %368 = vset.pattern.permute.xlu0 0
        %369 = vperm.xlu0 %368, %v365
        %v370 = vpop.permute.xlu0 %369
        %vm371 = vcmp.eq.s32.totalorder %v367, %v370
        %v372 = vsel %vm371, 1, 0
        %v373 = vcvt.s32.f32 %v372
        %v374 = vld [vmem:[%s270] sm:$0xff]
        %376 = vset.pattern.permute.xlu0 0
        %377 = vperm.xlu0 %376, %v374
        %v378 = vpop.permute.xlu0 %377
        %v380 = vmul.f32 %v373, %v378
        %v381 = vld [vmem:[#allocation2] sm:$0xff]
        %v382 = vld [vmem:[#allocation2 + $0x8] sm:$0xff]
        %v383 = vld [vmem:[#allocation2 + $0x10] sm:$0xff]
        %v384 = vld [vmem:[#allocation2 + $0x18] sm:$0xff]
        %v385 = vld [vmem:[%s275] sm:$0xff]
        %v386 = vld [vmem:[%s275 + $0x8] sm:$0xff]
        %v387 = vld [vmem:[%s275 + $0x10] sm:$0xff]
        %v388 = vld [vmem:[%s275 + $0x18] sm:$0xff]
        %v389 = vmul.f32 %v381, %v380
        %v390 = vmul.f32 %v382, %v380
        %v391 = vmul.f32 %v383, %v380
        %v392 = vmul.f32 %v384, %v380
        %394 = vset.pattern.permute.xlu0 0
        %395 = vperm.xlu0 %394, %v385
        %v396 = vpop.permute.xlu0 %395
        %399 = vset.pattern.permute.xlu0 0
        %400 = vperm.xlu0 %399, %v386
        %v401 = vpop.permute.xlu0 %400
        %404 = vset.pattern.permute.xlu0 0
        %405 = vperm.xlu0 %404, %v387
        %v406 = vpop.permute.xlu0 %405
        %409 = vset.pattern.permute.xlu0 0
        %410 = vperm.xlu0 %409, %v388
        %v411 = vpop.permute.xlu0 %410
        %v413 = vmul.f32 %v396, %v380
        %v414 = vmul.f32 %v401, %v380
        %v415 = vmul.f32 %v406, %v380
        %v416 = vmul.f32 %v411, %v380
        %v417 = vsub.f32 %v389, %v413
        %v418 = vsub.f32 %v390, %v414
        %v419 = vsub.f32 %v391, %v415
        %v420 = vsub.f32 %v392, %v416
        %v421 = vand.u32 2147483647, %v417
        %v422 = vand.u32 2147483647, %v418
        %v423 = vand.u32 2147483647, %v419
        %v424 = vand.u32 2147483647, %v420
        %vm425 = vcmp.lt.f32.partialorder %v421, 1.0
        %vm426 = vcmp.lt.f32.partialorder %v422, 1.0
        %vm427 = vcmp.lt.f32.partialorder %v423, 1.0
        %vm428 = vcmp.lt.f32.partialorder %v424, 1.0
        %v429 = vmul.f32 %v421, 0.5
        %v430 = vmul.f32 %v422, 0.5
        %v431 = vmul.f32 %v423, 0.5
        %v432 = vmul.f32 %v424, 0.5
        %v433 = vmul.f32 %v429, %v421
        %v434 = vmul.f32 %v430, %v422
        %v435 = vmul.f32 %v431, %v423
        %v436 = vmul.f32 %v432, %v424
        %v437 = vsub.f32 %v421, 0.5
        %v438 = vsub.f32 %v422, 0.5
        %v439 = vsub.f32 %v423, 0.5
        %v440 = vsub.f32 %v424, 0.5
        %v441 = vsel %vm425, %v433, %v437
        %v442 = vsel %vm426, %v434, %v438
        %v443 = vsel %vm427, %v435, %v439
        %v444 = vsel %vm428, %v436, %v440
        %vm445 = vcmask 130048
        %v446 = vsel %vm445, %v441, 0.0
        %v447 = vsel %vm445, %v442, 0.0
        %v448 = vadd.f32 %v446, %v447
        %v449 = vsel %vm445, %v443, 0.0
        %v450 = vadd.f32 %v448, %v449
        %v451 = vsel %vm445, %v444, 0.0
        %v452 = vadd.f32 %v450, %v451
        %v453 = vsel %vm445, %v452, 0.0
        %v454 = vrot.slane %v453, 4
        %v455 = vadd.f32 %v453, %v454
        %v456 = vrot.slane %v455, 2
        %v457 = vadd.f32 %v455, %v456
        %v458 = vrot.slane %v457, 1
        %v459 = vadd.f32 %v457, %v458
        %460 = vst.msk [vmem:[%s262] sm:$0x1] %vm283, %v459
        %s461 = sand.u32 %s140, 1
        %s462 = scalar_lea.sflag [#allocation7], %s461
        %s463 = sand.u32 %s140, 1
        %s464 = scalar_lea.vmem [#allocation8], %s463
        // Predicated region
        $region41: #{tpu_custom_call.1} parent=35 // pred_check
          %p465 = pneg %p150
        $region42: #{tpu_custom_call.1} parent=35 // pred_check_branch
          %467 = sbr.rel (%p465) target = $region44
        $region43: #{tpu_custom_call.1} parent=35 // pred_region
          %s469 = ssub.s32 16, 16
          %470 = vsyncadd %s462, %s469
          %s471 = smul.addr %s28, 16
          %s472 = scalar_lea.hbm %s5, %s471
          %s474 = sshll.u32 %s464, 4
          %s475 = int_to_ptr.vmem [resolvable:$true] %s474
          %477 = dma.vmem_to_hbm [thread:$0]  %s475, 16, %s472, %s462
        $region44: #{tpu_custom_call.1} parent=35 // pred_fallthru
          _
      $region36: #{tpu_custom_call.1} parent=5 // pred_fallthru
        _
      %p478 = scmp.le.s32.totalorder 2, %s23
      // Predicated region
      $region45: #{tpu_custom_call.1} parent=5 // pred_check
        %p479 = pneg %p478
      $region46: #{tpu_custom_call.1} parent=5 // pred_check_branch
        %481 = sbr.rel (%p479) target = $region48
      $region47: #{tpu_custom_call.1} parent=5 // pred_region
        %s482 = ssub.s32 %s23, 2
        // Predicated region
        $region49: #{tpu_custom_call.1} parent=47 // pred_check
          %p483 = pneg %p156
        $region50: #{tpu_custom_call.1} parent=47 // pred_check_branch
          %485 = sbr.rel (%p483) target = $region52
        $region51: #{tpu_custom_call.1} parent=47 // pred_region
          %s486 = sand.u32 %s141, 1
          %s487 = scalar_lea.sflag [#allocation7], %s486
          %s488 = sand.u32 %s141, 1
          %s489 = scalar_lea.vmem [#allocation8], %s488
          %490 = dma.done %s487, 16
        $region52: #{tpu_custom_call.1} parent=47 // pred_fallthru
          _
      $region48: #{tpu_custom_call.1} parent=5 // pred_fallthru
        _
    $region6: #{tpu_custom_call.1} parent=1 // loop_footer
      %s27 = sadd.s32 1, %s23
    $region7: #{tpu_custom_call.1} parent=1 // loop_footer_branch
      %22 = sbr.rel target = $region3
    $region8: #{tpu_custom_call.1} parent=1 // loop_exit
      _
    %491 = vsyncpa [#allocation6], 1
    %s492 = scalar_lea.sflag [#allocation6], 1
    %493 = vsyncpa %s492, 1
    %494 = vsyncpa [#allocation7], 1
    %s495 = scalar_lea.sflag [#allocation7], 1
    %496 = vsyncpa %s495, 1

</llo_original>
